<compile_context>
chip_gen: v7x
topology: tpu7x:2x2x1
jax: 0.10.0
libtpu: 0.0.40
codegen_flags: <defaults>
</compile_context>

<pallas_src>
import jax
import jax.numpy as jnp
from jax.experimental import pallas as pl
from jax.experimental.pallas import tpu as pltpu

H = 64            # the module hard-codes range(0, 64, 2) -> spatial dims must be 64
W = 64
HO = H // 2       # 32
WO = W // 2       # 32
RG = 8            # input rows packed per lane-dense view row
LANES_IN = RG * W            # 512
LANES_OUT = (RG // 2) * WO   # 128


def sup_res2_kernel(x_ref, mask_ref, s_ref, o_ref):
    # x_ref:    (nb, 8, 512)   nb planes, 8 input rows packed on the lane axis
    # mask_ref: (8, 512) int32  1 where the input row is the selected one of its pair
    # s_ref:    (512, 128) bf16 block-diagonal one-hot: column gather (randi) + 2:1 compaction
    # o_ref:    (nb, 8, 128)
    nb = x_ref.shape[0]
    keep = mask_ref[...] != 0                        # (8, 512) bool
    x = x_ref[...]                                   # (nb, 8, 512)
    masked = jnp.where(keep[None, :, :], x, 0)       # zero the unselected row of each pair
    lhs = masked.reshape(nb * RG, LANES_IN)          # free: dim 1 is one f32 sublane tile
    s = s_ref[...]

    if x.dtype == jnp.float32:
        # Exact 3-way bf16 split: x == hi + (mid + lo) bit-exactly, and each
        # one-hot matmul returns the chunk of the selected element exactly.
        hi = lhs.astype(jnp.bfloat16)
        r1 = lhs - hi.astype(jnp.float32)
        mid = r1.astype(jnp.bfloat16)
        lo = (r1 - mid.astype(jnp.float32)).astype(jnp.bfloat16)
        out = jnp.dot(mid, s, preferred_element_type=jnp.float32)
        out = out + jnp.dot(lo, s, preferred_element_type=jnp.float32)   # = (mid+lo)_sel, exact
        out = out + jnp.dot(hi, s, preferred_element_type=jnp.float32)   # = x_sel, exact
    else:
        # bf16 input: one-hot bf16 x bf16 with f32 accumulation is already exact.
        out = jnp.dot(lhs, s, preferred_element_type=jnp.float32)

    o_ref[...] = out.reshape(nb, RG, LANES_OUT).astype(o_ref.dtype)


def _largest_divisor_leq(n, cap):
    cap = min(cap, n)
    best, d = 1, 1
    while d * d <= n:
        if n % d == 0:
            q = n // d
            if d <= cap and d > best:
                best = d
            if q <= cap and q > best:
                best = q
        d += 1
    return best


def _pick_target_and_vmem(dtype):
    """Generation-aware plane-batch target + scoped-VMEM request."""
    # Conservative default: assume the small-VMEM generation (v7x, 64 MiB/TC)
    # if the hardware query fails — NOT the 128 MiB branch.
    vmem_phys = 64 << 20
    try:
        info = pltpu.get_tpu_info()
        v = getattr(info, "vmem_capacity_bytes", None)
        if v:
            vmem_phys = int(v)
    except Exception:
        pass
    wide = jnp.dtype(dtype).itemsize >= 4
    if vmem_phys >= (96 << 20):
        # v5e / v6e: 128 MiB physical VMEM.
        target = 256 if wide else 512
        vmem_limit = 64 << 20
    else:
        # v7x (or unknown): 64 MiB per TensorCore — stay well under it
        # (the f32 path materializes the 3-way bf16 split in VMEM).
        target = 128 if wide else 256
        vmem_limit = 40 << 20
    return target, vmem_limit


def _choose_n_blk(bc, target):
    target = max(1, min(target, bc))
    if bc <= target:
        return bc
    best = _largest_divisor_leq(bc, target)
    # Prefer an even number of grid steps so ("parallel",) shards evenly across
    # the two v7x TensorCores — unless it costs more than 2x in block size.
    if bc % 2 == 0:
        best_even = _largest_divisor_leq(bc // 2, target)
        if 2 * best_even >= best:
            best = best_even
    if best >= max(8, target // 8):
        return best
    # bc has no useful divisor (e.g. a large prime): use the target block size
    # and let Pallas mask the ragged edge block — never jnp.pad (that is a full
    # extra HBM round-trip of the input for a mem-bound kernel).
    return target


def _build_selectors(randi, randj):
    ri = randi.astype(jnp.int32)
    rj = randj.astype(jnp.int32)

    # Row-parity mask (8, 512): mask[g, 64*r + w] = 1 iff local row r of group g
    # is the selected row of its pair. Relies on randj[p] in {2p, 2p+1}, which
    # is exactly what the PyTorch module generates.
    # TODO(synk): arbitrary row permutations would need a full row one-hot.
    pj = (rj % 2).reshape(RG, RG // 2)                 # (8, 4): parity per (group, local pair)
    lr = jnp.arange(RG, dtype=jnp.int32)               # local input row within a group of 8
    row_sel = ((lr[None, :] % 2) == pj[:, lr // 2]).astype(jnp.int32)   # (8, 8)
    mask = jnp.repeat(row_sel, W, axis=1)              # (8, 512)

    # Block-diagonal one-hot selector (512, 128): column gather by randi plus
    # 2:1 row compaction (4 output rows of 32 columns per 128 output lanes).
    in_row = jnp.arange(LANES_IN, dtype=jnp.int32) // W       # 0..7
    in_col = jnp.arange(LANES_IN, dtype=jnp.int32) % W        # 0..63
    out_pair = jnp.arange(LANES_OUT, dtype=jnp.int32) // WO   # 0..3
    out_col = jnp.arange(LANES_OUT, dtype=jnp.int32) % WO     # 0..31
    sel = ((in_row[:, None] // 2 == out_pair[None, :]) &
           (in_col[:, None] == ri[out_col][None, :])).astype(jnp.bfloat16)   # (512, 128)
    return mask, sel


def sup_res2(x, randi, randj, b=False, n_blk=None):
    """Pallas implementation of Sup_res2.forward.

    x: (B, C, 64, 64) float32 or bfloat16.
    randi, randj: int arrays of shape (32,), randi[k]/randj[k] in {2k, 2k+1}
                  (the form the PyTorch module generates).
    """
    B, C, h, w = x.shape
    assert h == H and w == W, "Sup_res2 requires 64x64 spatial dims"
    dt = jnp.dtype(x.dtype)
    if dt not in (jnp.dtype(jnp.float32), jnp.dtype(jnp.bfloat16)):
        # TODO(synk): other float dtypes would need their own exact-split rule.
        raise NotImplementedError(f"sup_res2: unsupported dtype {dt}")
    itemsize = dt.itemsize
    bc = B * C

    target, vmem_limit = _pick_target_and_vmem(dt)
    if n_blk is None:
        n_blk = _choose_n_blk(bc, target)
    else:
        n_blk = max(1, min(n_blk, bc))
    grid = (pl.cdiv(bc, n_blk),)

    mask, sel = _build_selectors(randi, randj)

    # FREE row-major views: (B, C, 64, 64) -> (B*C, 8, 512) packs 8 consecutive
    # input rows onto the lane axis; the (B*C, 8, 128) output view packs the 4
    # corresponding compacted output rows. No HBM transpose, no jnp.pad.
    xv = x.reshape(bc, RG, LANES_IN)

    n_mm = 3 if dt == jnp.dtype(jnp.float32) else 1
    out = pl.pallas_call(
        sup_res2_kernel,
        out_shape=jax.ShapeDtypeStruct((bc, RG, LANES_OUT), dt),
        grid_spec=pl.GridSpec(
            grid=grid,
            in_specs=[
                pl.BlockSpec((n_blk, RG, LANES_IN), lambda n: (n, 0, 0)),
                pl.BlockSpec((RG, LANES_IN), lambda n: (0, 0)),
                pl.BlockSpec((LANES_IN, LANES_OUT), lambda n: (0, 0)),
            ],
            out_specs=pl.BlockSpec((n_blk, RG, LANES_OUT), lambda n: (n, 0, 0)),
        ),
        compiler_params=pltpu.CompilerParams(
            dimension_semantics=("parallel",),
            vmem_limit_bytes=vmem_limit,
        ),
        cost_estimate=pl.CostEstimate(
            flops=2 * bc * RG * LANES_IN * LANES_OUT * n_mm,
            transcendentals=0,
            bytes_accessed=bc * (H * W + HO * WO) * itemsize,
        ),
    )(xv, mask, sel)

    out = out.reshape(B, C, HO, WO)
    if b:
        # TODO(synk): PyTorch path returns .cuda(); device placement is a no-op here.
        return out
    # Matches torch .squeeze(): drops ALL unit dims (rank hazard if B==1 or C==1).
    return jnp.squeeze(out)


def _reference(x, randi, randj):
    # Pure-JAX reference of the two index_selects.
    return x[:, :, randj, :][:, :, :, randi]


if __name__ == "__main__":
    key = jax.random.PRNGKey(0)
    kx, ki, kj = jax.random.split(key, 3)

    # Small but consistent shapes: the module requires 64x64 spatial dims.
    B, C = 2, 4
    x = jax.random.normal(kx, (B, C, H, W), dtype=jnp.float32)

    # Deterministic stand-in for random.randint(h, h+1) in forward().
    bits_i = jax.random.randint(ki, (WO,), 0, 2)
    bits_j = jax.random.randint(kj, (HO,), 0, 2)
    randi = (2 * jnp.arange(WO) + bits_i).astype(jnp.int32)
    randj = (2 * jnp.arange(HO) + bits_j).astype(jnp.int32)

    out = sup_res2(x, randi, randj, b=False)
    out = jax.block_until_ready(out)

    ref = jnp.squeeze(_reference(x, randi, randj))
    assert out.shape == (B, C, HO, WO), out.shape
    assert jnp.allclose(out, ref, rtol=0.0, atol=1e-6), "mismatch vs reference gather"

    print("KERNEL_OK")
</pallas_src>

<mosaic_0001>
module attributes {stable_mosaic.version = 11 : i64} {
  func.func @sup_res2_kernel(%arg0: i32, %arg1: memref<8x8x512xf32, #tpu.memory_space<vmem>>, %arg2: memref<8x512xi32, #tpu.memory_space<vmem>>, %arg3: memref<512x128xbf16, #tpu.memory_space<vmem>>, %arg4: memref<8x8x128xf32, #tpu.memory_space<vmem>>) attributes {dimension_semantics = [#tpu.dimension_semantics<parallel>], iteration_bounds = array<i64: 1>, scalar_prefetch = 0 : i64, scratch_operands = 0 : i64, tpu.core_type = #tpu.core_type<tc>, window_params = [{transform_indices = @transform_0, window_bounds = array<i64: 8, 8, 512>}, {pipeline_mode = #tpu.pipeline_mode<synchronous>, transform_indices = @transform_1, window_bounds = array<i64: 8, 512>}, {pipeline_mode = #tpu.pipeline_mode<synchronous>, transform_indices = @transform_2, window_bounds = array<i64: 512, 128>}, {transform_indices = @transform_3, window_bounds = array<i64: 8, 8, 128>}]} {
    %c0 = arith.constant 0 : index
    %c0_0 = arith.constant 0 : index
    %0 = vector.load %arg2[%c0, %c0_0] : memref<8x512xi32, #tpu.memory_space<vmem>>, vector<8x512xi32>
    %c0_i32 = arith.constant 0 : i32
    %1 = vector.broadcast %c0_i32 : i32 to vector<8x512xi32>
    %2 = arith.cmpi ne, %0, %1 : vector<8x512xi32>
    %c0_1 = arith.constant 0 : index
    %c0_2 = arith.constant 0 : index
    %c0_3 = arith.constant 0 : index
    %3 = vector.load %arg1[%c0_1, %c0_2, %c0_3] : memref<8x8x512xf32, #tpu.memory_space<vmem>>, vector<8x8x512xf32>
    %4 = vector.shape_cast %2 : vector<8x512xi1> to vector<1x8x512xi1>
    %c0_i32_4 = arith.constant 0 : i32
    %5 = arith.sitofp %c0_i32_4 : i32 to f32
    %6 = vector.shape_cast %4 : vector<1x8x512xi1> to vector<1x8x512xi1>
    %7 = vector.broadcast %6 : vector<1x8x512xi1> to vector<8x8x512xi1>
    %8 = vector.broadcast %5 : f32 to vector<8x8x512xf32>
    %9 = arith.select %7, %3, %8 : vector<8x8x512xi1>, vector<8x8x512xf32>
    %10 = vector.shape_cast %9 : vector<8x8x512xf32> to vector<64x512xf32>
    %c0_5 = arith.constant 0 : index
    %c0_6 = arith.constant 0 : index
    %11 = vector.load %arg3[%c0_5, %c0_6] : memref<512x128xbf16, #tpu.memory_space<vmem>>, vector<512x128xbf16>
    %12 = arith.truncf %10 : vector<64x512xf32> to vector<64x512xbf16>
    %13 = arith.extf %12 : vector<64x512xbf16> to vector<64x512xf32>
    %14 = arith.subf %10, %13 : vector<64x512xf32>
    %15 = arith.truncf %14 : vector<64x512xf32> to vector<64x512xbf16>
    %16 = arith.extf %15 : vector<64x512xbf16> to vector<64x512xf32>
    %17 = arith.subf %14, %16 : vector<64x512xf32>
    %18 = arith.truncf %17 : vector<64x512xf32> to vector<64x512xbf16>
    %cst = arith.constant dense<0.000000e+00> : vector<64x128xf32>
    %19 = tpu.matmul %15, %11, %cst {dimension_numbers = #tpu.dot_dimension_numbers<[1], [0], [0], [1], [0, 0, 1, 1], [], []>} : vector<64x512xbf16>, vector<512x128xbf16>, vector<64x128xf32> -> vector<64x128xf32>
    %cst_7 = arith.constant dense<0.000000e+00> : vector<64x128xf32>
    %20 = tpu.matmul %18, %11, %cst_7 {dimension_numbers = #tpu.dot_dimension_numbers<[1], [0], [0], [1], [0, 0, 1, 1], [], []>} : vector<64x512xbf16>, vector<512x128xbf16>, vector<64x128xf32> -> vector<64x128xf32>
    %21 = arith.addf %19, %20 : vector<64x128xf32>
    %cst_8 = arith.constant dense<0.000000e+00> : vector<64x128xf32>
    %22 = tpu.matmul %12, %11, %cst_8 {dimension_numbers = #tpu.dot_dimension_numbers<[1], [0], [0], [1], [0, 0, 1, 1], [], []>} : vector<64x512xbf16>, vector<512x128xbf16>, vector<64x128xf32> -> vector<64x128xf32>
    %23 = arith.addf %21, %22 : vector<64x128xf32>
    %24 = vector.shape_cast %23 : vector<64x128xf32> to vector<8x8x128xf32>
    %c0_9 = arith.constant 0 : index
    %c0_10 = arith.constant 0 : index
    %c0_11 = arith.constant 0 : index
    %25 = vector.load %arg4[%c0_9, %c0_10, %c0_11] : memref<8x8x128xf32, #tpu.memory_space<vmem>>, vector<8x8x128xf32>
    tpu.vector_store %arg4[%c0_9, %c0_10, %c0_11], %24 {strides = array<i32>} : memref<8x8x128xf32, #tpu.memory_space<vmem>>, vector<8x8x128xf32>,
    return
  }
  func.func @transform_0(%arg0: i32) -> (i32, i32, i32) {
    %c0_i32 = arith.constant 0 : i32
    %c0_i32_0 = arith.constant 0 : i32
    %c0_i32_1 = arith.constant 0 : i32
    return %arg0, %c0_i32, %c0_i32_0 : i32, i32, i32
  }
  func.func @transform_1(%arg0: i32) -> (i32, i32) {
    %c0_i32 = arith.constant 0 : i32
    %c0_i32_0 = arith.constant 0 : i32
    %c0_i32_1 = arith.constant 0 : i32
    return %c0_i32, %c0_i32_0 : i32, i32
  }
  func.func @transform_2(%arg0: i32) -> (i32, i32) {
    %c0_i32 = arith.constant 0 : i32
    %c0_i32_0 = arith.constant 0 : i32
    %c0_i32_1 = arith.constant 0 : i32
    return %c0_i32, %c0_i32_0 : i32, i32
  }
  func.func @transform_3(%arg0: i32) -> (i32, i32, i32) {
    %c0_i32 = arith.constant 0 : i32
    %c0_i32_0 = arith.constant 0 : i32
    %c0_i32_1 = arith.constant 0 : i32
    return %arg0, %c0_i32, %c0_i32_0 : i32, i32, i32
  }
}

</mosaic_0001>

<llo_original>
// kernel: tpu_custom_call.1
$region0: #{tpu_custom_call.1}
  #allocation0 [shape = 'u32[]', space=smem, size = 0x4, offset = 0x4, fixed_abs, tag = 'smem constant byte address 0x4 - core index']
  #allocation1 [shape = 'u32[144,128]{1,0:T(1,128)}', space=vmem, size = 0x12000, scoped, tag = 'internal scratch']
  %s0 = inlined_call_operand.hbm [shape: f32[8,8,512], index: 0, kind: input, shape index: {}]
  %s1 = inlined_call_operand.hbm [shape: s32[8,512], index: 1, kind: input, shape index: {}]
  %s2 = inlined_call_operand.hbm [shape: bf16[512,128], index: 2, kind: input, shape index: {}]
  %s3 = inlined_call_operand.hbm [shape: f32[8,8,128], index: 3, kind: output, shape index: {}]
  %s4 = sld [smem:[#allocation0]]
  $region34: #{tpu_custom_call.1} parent=0
    _
  %s6 = ssub.s32 1, %s4
  %s7 = scalar_select 0, %s6, %s4
  $region1: #{tpu_custom_call.1} parent=0
    #allocation2 [shape = 'u8[131072]{0}', space=vmem, size = 0x20000, scoped, tag = 'input window, operand 0, single buffered']
    #allocation3 [shape = 's32[1]{0}', space=sflag, size = 0x4, scoped, tag = 'scoped memory for tpu_custom_call.1']
    #allocation4 [shape = 's32[1]{0}', space=sflag, size = 0x4, scoped, tag = 'scoped memory for tpu_custom_call.1']
    #allocation5 [shape = 'u8[16384]{0}', space=vmem, size = 0x4000, scoped, tag = 'input window, operand 1, single buffered']
    #allocation6 [shape = 's32[1]{0}', space=sflag, size = 0x4, scoped, tag = 'scoped memory for tpu_custom_call.1']
    #allocation7 [shape = 'u8[131072]{0}', space=vmem, size = 0x20000, scoped, tag = 'input window, operand 2, single buffered']
    #allocation8 [shape = 'u8[32768]{0}', space=vmem, size = 0x8000, scoped, tag = 'output window, operand 0, single buffered']
    %8 = vsyncpa [#allocation3], 0
    %9 = vsyncpa [#allocation6], 0
    %10 = vsyncpa [#allocation4], 0
    // Predicated region
    $region2: #{tpu_custom_call.1} parent=1 // pred_check
      _
    $region3: #{tpu_custom_call.1} parent=1 // pred_check_branch
      %12 = sbr.rel (0) target = $region5
    $region4: #{tpu_custom_call.1} parent=1 // pred_region
      %s14 = ssub.s32 4096, 4096
      %15 = vsyncadd [#allocation3], %s14
      %s16 = sshll.u32 [#allocation2], 4
      %s17 = int_to_ptr.vmem [resolvable:$true] %s16
      %22 = dma.hbm_to_vmem [thread:$0]  %s0, 4096, %s17, [#allocation3], 512, 512, 32
    $region5: #{tpu_custom_call.1} parent=1 // pred_fallthru
      _
    // Predicated region
    $region6: #{tpu_custom_call.1} parent=1 // pred_check
      _
    $region7: #{tpu_custom_call.1} parent=1 // pred_check_branch
      %24 = sbr.rel (0) target = $region9
    $region8: #{tpu_custom_call.1} parent=1 // pred_region
      %s26 = ssub.s32 512, 512
      %27 = vsyncadd [#allocation6], %s26
      %s29 = sshll.u32 [#allocation5], 4
      %s30 = int_to_ptr.vmem [resolvable:$true] %s29
      %32 = dma.hbm_to_vmem [thread:$0]  %s1, 512, %s30, [#allocation6]
    $region9: #{tpu_custom_call.1} parent=1 // pred_fallthru
      _
    // Predicated region
    $region10: #{tpu_custom_call.1} parent=1 // pred_check
      _
    $region11: #{tpu_custom_call.1} parent=1 // pred_check_branch
      %34 = sbr.rel (0) target = $region13
    $region12: #{tpu_custom_call.1} parent=1 // pred_region
      %s36 = ssub.s32 4096, 4096
      %37 = vsyncadd [#allocation6], %s36
      %s38 = sshll.u32 [#allocation7], 4
      %s39 = int_to_ptr.vmem [resolvable:$true] %s38
      %44 = dma.hbm_to_vmem [thread:$0]  %s2, 4096, %s39, [#allocation6], 64, 64, 4
    $region13: #{tpu_custom_call.1} parent=1 // pred_fallthru
      _
    // Predicated region
    $region14: #{tpu_custom_call.1} parent=1 // pred_check
      _
    $region15: #{tpu_custom_call.1} parent=1 // pred_check_branch
      %46 = sbr.rel (0) target = $region17
    $region16: #{tpu_custom_call.1} parent=1 // pred_region
      %47 = dma.done [#allocation3], 4096
    $region17: #{tpu_custom_call.1} parent=1 // pred_fallthru
      _
    // Predicated region
    $region18: #{tpu_custom_call.1} parent=1 // pred_check
      _
    $region19: #{tpu_custom_call.1} parent=1 // pred_check_branch
      %49 = sbr.rel (0) target = $region21
    $region20: #{tpu_custom_call.1} parent=1 // pred_region
      %50 = dma.done [#allocation6], 512
    $region21: #{tpu_custom_call.1} parent=1 // pred_fallthru
      _
    // Predicated region
    $region22: #{tpu_custom_call.1} parent=1 // pred_check
      _
    $region23: #{tpu_custom_call.1} parent=1 // pred_check_branch
      %52 = sbr.rel (0) target = $region25
    $region24: #{tpu_custom_call.1} parent=1 // pred_region
      %53 = dma.done [#allocation6], 4096
    $region25: #{tpu_custom_call.1} parent=1 // pred_fallthru
      _
    %v55 = vld [vmem:[#allocation5] sm:$0xff]
    %v56 = vld [vmem:[#allocation5 + $0x8] sm:$0xff]
    %v57 = vld [vmem:[#allocation5 + $0x10] sm:$0xff]
    %v58 = vld [vmem:[#allocation5 + $0x18] sm:$0xff]
    %vm59 = vcmp.ne.s32.totalorder %v55, 0
    %vm60 = vcmp.ne.s32.totalorder %v56, 0
    %vm61 = vcmp.ne.s32.totalorder %v57, 0
    %vm62 = vcmp.ne.s32.totalorder %v58, 0
    %v63 = vld [vmem:[#allocation2] sm:$0xff]
    %v64 = vld [vmem:[#allocation2 + $0x8] sm:$0xff]
    %v65 = vld [vmem:[#allocation2 + $0x10] sm:$0xff]
    %v66 = vld [vmem:[#allocation2 + $0x18] sm:$0xff]
    %v67 = vld [vmem:[#allocation2 + $0x20] sm:$0xff]
    %v68 = vld [vmem:[#allocation2 + $0x28] sm:$0xff]
    %v69 = vld [vmem:[#allocation2 + $0x30] sm:$0xff]
    %v70 = vld [vmem:[#allocation2 + $0x38] sm:$0xff]
    %v71 = vld [vmem:[#allocation2 + $0x40] sm:$0xff]
    %v72 = vld [vmem:[#allocation2 + $0x48] sm:$0xff]
    %v73 = vld [vmem:[#allocation2 + $0x50] sm:$0xff]
    %v74 = vld [vmem:[#allocation2 + $0x58] sm:$0xff]
    %v75 = vld [vmem:[#allocation2 + $0x60] sm:$0xff]
    %v76 = vld [vmem:[#allocation2 + $0x68] sm:$0xff]
    %v77 = vld [vmem:[#allocation2 + $0x70] sm:$0xff]
    %v78 = vld [vmem:[#allocation2 + $0x78] sm:$0xff]
    %v79 = vld [vmem:[#allocation2 + $0x80] sm:$0xff]
    %v80 = vld [vmem:[#allocation2 + $0x88] sm:$0xff]
    %v81 = vld [vmem:[#allocation2 + $0x90] sm:$0xff]
    %v82 = vld [vmem:[#allocation2 + $0x98] sm:$0xff]
    %v83 = vld [vmem:[#allocation2 + $0xa0] sm:$0xff]
    %v84 = vld [vmem:[#allocation2 + $0xa8] sm:$0xff]
    %v85 = vld [vmem:[#allocation2 + $0xb0] sm:$0xff]
    %v86 = vld [vmem:[#allocation2 + $0xb8] sm:$0xff]
    %v87 = vld [vmem:[#allocation2 + $0xc0] sm:$0xff]
    %v88 = vld [vmem:[#allocation2 + $0xc8] sm:$0xff]
    %v89 = vld [vmem:[#allocation2 + $0xd0] sm:$0xff]
    %v90 = vld [vmem:[#allocation2 + $0xd8] sm:$0xff]
    %v91 = vld [vmem:[#allocation2 + $0xe0] sm:$0xff]
    %v92 = vld [vmem:[#allocation2 + $0xe8] sm:$0xff]
    %v93 = vld [vmem:[#allocation2 + $0xf0] sm:$0xff]
    %v94 = vld [vmem:[#allocation2 + $0xf8] sm:$0xff]
    %v95 = vsel %vm59, 1, 0
    %v96 = vsel %vm60, 1, 0
    %v97 = vsel %vm61, 1, 0
    %v98 = vsel %vm62, 1, 0
    %vm99 = vcmp.eq.s32.totalorder %v95, 1
    %vm100 = vcmp.eq.s32.totalorder %v96, 1
    %vm101 = vcmp.eq.s32.totalorder %v97, 1
    %vm102 = vcmp.eq.s32.totalorder %v98, 1
    %v103 = vsel %vm99, %v63, 0.0
    %v104 = vsel %vm100, %v64, 0.0
    %v105 = vsel %vm101, %v65, 0.0
    %v106 = vsel %vm102, %v66, 0.0
    %v107 = vsel %vm99, %v67, 0.0
    %v108 = vsel %vm100, %v68, 0.0
    %v109 = vsel %vm101, %v69, 0.0
    %v110 = vsel %vm102, %v70, 0.0
    %v111 = vsel %vm99, %v71, 0.0
    %v112 = vsel %vm100, %v72, 0.0
    %v113 = vsel %vm101, %v73, 0.0
    %v114 = vsel %vm102, %v74, 0.0
    %v115 = vsel %vm99, %v75, 0.0
    %v116 = vsel %vm100, %v76, 0.0
    %v117 = vsel %vm101, %v77, 0.0
    %v118 = vsel %vm102, %v78, 0.0
    %v119 = vsel %vm99, %v79, 0.0
    %v120 = vsel %vm100, %v80, 0.0
    %v121 = vsel %vm101, %v81, 0.0
    %v122 = vsel %vm102, %v82, 0.0
    %v123 = vsel %vm99, %v83, 0.0
    %v124 = vsel %vm100, %v84, 0.0
    %v125 = vsel %vm101, %v85, 0.0
    %v126 = vsel %vm102, %v86, 0.0
    %v127 = vsel %vm99, %v87, 0.0
    %v128 = vsel %vm100, %v88, 0.0
    %v129 = vsel %vm101, %v89, 0.0
    %v130 = vsel %vm102, %v90, 0.0
    %v131 = vsel %vm99, %v91, 0.0
    %v132 = vsel %vm100, %v92, 0.0
    %v133 = vsel %vm101, %v93, 0.0
    %v134 = vsel %vm102, %v94, 0.0
    %v135 = vld [vmem:[#allocation7] sm:$0xf]
    %v136 = vld [vmem:[#allocation7 + $0x4] sm:$0xf]
    %v137 = vld [vmem:[#allocation7 + $0x8] sm:$0xf]
    %v138 = vld [vmem:[#allocation7 + $0xc] sm:$0xf]
    %v139 = vld [vmem:[#allocation7 + $0x10] sm:$0xf]
    %v140 = vld [vmem:[#allocation7 + $0x14] sm:$0xf]
    %v141 = vld [vmem:[#allocation7 + $0x18] sm:$0xf]
    %v142 = vld [vmem:[#allocation7 + $0x1c] sm:$0xf]
    %v143 = vld [vmem:[#allocation7 + $0x20] sm:$0xf]
    %v144 = vld [vmem:[#allocation7 + $0x24] sm:$0xf]
    %v145 = vld [vmem:[#allocation7 + $0x28] sm:$0xf]
    %v146 = vld [vmem:[#allocation7 + $0x2c] sm:$0xf]
    %v147 = vld [vmem:[#allocation7 + $0x30] sm:$0xf]
    %v148 = vld [vmem:[#allocation7 + $0x34] sm:$0xf]
    %v149 = vld [vmem:[#allocation7 + $0x38] sm:$0xf]
    %v150 = vld [vmem:[#allocation7 + $0x3c] sm:$0xf]
    %v151 = vld [vmem:[#allocation7 + $0x40] sm:$0xf]
    %v152 = vld [vmem:[#allocation7 + $0x44] sm:$0xf]
    %v153 = vld [vmem:[#allocation7 + $0x48] sm:$0xf]
    %v154 = vld [vmem:[#allocation7 + $0x4c] sm:$0xf]
    %v155 = vld [vmem:[#allocation7 + $0x50] sm:$0xf]
    %v156 = vld [vmem:[#allocation7 + $0x54] sm:$0xf]
    %v157 = vld [vmem:[#allocation7 + $0x58] sm:$0xf]
    %v158 = vld [vmem:[#allocation7 + $0x5c] sm:$0xf]
    %v159 = vld [vmem:[#allocation7 + $0x60] sm:$0xf]
    %v160 = vld [vmem:[#allocation7 + $0x64] sm:$0xf]
    %v161 = vld [vmem:[#allocation7 + $0x68] sm:$0xf]
    %v162 = vld [vmem:[#allocation7 + $0x6c] sm:$0xf]
    %v163 = vld [vmem:[#allocation7 + $0x70] sm:$0xf]
    %v164 = vld [vmem:[#allocation7 + $0x74] sm:$0xf]
    %v165 = vld [vmem:[#allocation7 + $0x78] sm:$0xf]
    %v166 = vld [vmem:[#allocation7 + $0x7c] sm:$0xf]
    %v167 = vld [vmem:[#allocation7 + $0x80] sm:$0xf]
    %v168 = vld [vmem:[#allocation7 + $0x84] sm:$0xf]
    %v169 = vld [vmem:[#allocation7 + $0x88] sm:$0xf]
    %v170 = vld [vmem:[#allocation7 + $0x8c] sm:$0xf]
    %v171 = vld [vmem:[#allocation7 + $0x90] sm:$0xf]
    %v172 = vld [vmem:[#allocation7 + $0x94] sm:$0xf]
    %v173 = vld [vmem:[#allocation7 + $0x98] sm:$0xf]
    %v174 = vld [vmem:[#allocation7 + $0x9c] sm:$0xf]
    %v175 = vld [vmem:[#allocation7 + $0xa0] sm:$0xf]
    %v176 = vld [vmem:[#allocation7 + $0xa4] sm:$0xf]
    %v177 = vld [vmem:[#allocation7 + $0xa8] sm:$0xf]
    %v178 = vld [vmem:[#allocation7 + $0xac] sm:$0xf]
    %v179 = vld [vmem:[#allocation7 + $0xb0] sm:$0xf]
    %v180 = vld [vmem:[#allocation7 + $0xb4] sm:$0xf]
    %v181 = vld [vmem:[#allocation7 + $0xb8] sm:$0xf]
    %v182 = vld [vmem:[#allocation7 + $0xbc] sm:$0xf]
    %v183 = vld [vmem:[#allocation7 + $0xc0] sm:$0xf]
    %v184 = vld [vmem:[#allocation7 + $0xc4] sm:$0xf]
    %v185 = vld [vmem:[#allocation7 + $0xc8] sm:$0xf]
    %v186 = vld [vmem:[#allocation7 + $0xcc] sm:$0xf]
    %v187 = vld [vmem:[#allocation7 + $0xd0] sm:$0xf]
    %v188 = vld [vmem:[#allocation7 + $0xd4] sm:$0xf]
    %v189 = vld [vmem:[#allocation7 + $0xd8] sm:$0xf]
    %v190 = vld [vmem:[#allocation7 + $0xdc] sm:$0xf]
    %v191 = vld [vmem:[#allocation7 + $0xe0] sm:$0xf]
    %v192 = vld [vmem:[#allocation7 + $0xe4] sm:$0xf]
    %v193 = vld [vmem:[#allocation7 + $0xe8] sm:$0xf]
    %v194 = vld [vmem:[#allocation7 + $0xec] sm:$0xf]
    %v195 = vld [vmem:[#allocation7 + $0xf0] sm:$0xf]
    %v196 = vld [vmem:[#allocation7 + $0xf4] sm:$0xf]
    %v197 = vld [vmem:[#allocation7 + $0xf8] sm:$0xf]
    %v198 = vld [vmem:[#allocation7 + $0xfc] sm:$0xf]
    %v199 = vpack.c.bf16 %v107, %v103
    %v200 = vpack.c.bf16 %v108, %v104
    %v201 = vpack.c.bf16 %v109, %v105
    %v202 = vpack.c.bf16 %v110, %v106
    %v203 = vpack.c.bf16 %v115, %v111
    %v204 = vpack.c.bf16 %v116, %v112
    %v205 = vpack.c.bf16 %v117, %v113
    %v206 = vpack.c.bf16 %v118, %v114
    %v207 = vpack.c.bf16 %v123, %v119
    %v208 = vpack.c.bf16 %v124, %v120
    %v209 = vpack.c.bf16 %v125, %v121
    %v210 = vpack.c.bf16 %v126, %v122
    %v211 = vpack.c.bf16 %v131, %v127
    %v212 = vpack.c.bf16 %v132, %v128
    %v213 = vpack.c.bf16 %v133, %v129
    %v214 = vpack.c.bf16 %v134, %v130
    %v215 = vunpack.c.l.bf16 %v199
    %v216 = vunpack.c.l.bf16 %v200
    %v217 = vunpack.c.l.bf16 %v201
    %v218 = vunpack.c.l.bf16 %v202
    %v219 = vunpack.c.h.bf16 %v199
    %v220 = vunpack.c.h.bf16 %v200
    %v221 = vunpack.c.h.bf16 %v201
    %v222 = vunpack.c.h.bf16 %v202
    %v223 = vunpack.c.l.bf16 %v203
    %v224 = vunpack.c.l.bf16 %v204
    %v225 = vunpack.c.l.bf16 %v205
    %v226 = vunpack.c.l.bf16 %v206
    %v227 = vunpack.c.h.bf16 %v203
    %v228 = vunpack.c.h.bf16 %v204
    %v229 = vunpack.c.h.bf16 %v205
    %v230 = vunpack.c.h.bf16 %v206
    %v231 = vunpack.c.l.bf16 %v207
    %v232 = vunpack.c.l.bf16 %v208
    %v233 = vunpack.c.l.bf16 %v209
    %v234 = vunpack.c.l.bf16 %v210
    %v235 = vunpack.c.h.bf16 %v207
    %v236 = vunpack.c.h.bf16 %v208
    %v237 = vunpack.c.h.bf16 %v209
    %v238 = vunpack.c.h.bf16 %v210
    %v239 = vunpack.c.l.bf16 %v211
    %v240 = vunpack.c.l.bf16 %v212
    %v241 = vunpack.c.l.bf16 %v213
    %v242 = vunpack.c.l.bf16 %v214
    %v243 = vunpack.c.h.bf16 %v211
    %v244 = vunpack.c.h.bf16 %v212
    %v245 = vunpack.c.h.bf16 %v213
    %v246 = vunpack.c.h.bf16 %v214
    %v247 = vsub.f32 %v103, %v215
    %v248 = vsub.f32 %v104, %v216
    %v249 = vsub.f32 %v105, %v217
    %v250 = vsub.f32 %v106, %v218
    %v251 = vsub.f32 %v107, %v219
    %v252 = vsub.f32 %v108, %v220
    %v253 = vsub.f32 %v109, %v221
    %v254 = vsub.f32 %v110, %v222
    %v255 = vsub.f32 %v111, %v223
    %v256 = vsub.f32 %v112, %v224
    %v257 = vsub.f32 %v113, %v225
    %v258 = vsub.f32 %v114, %v226
    %v259 = vsub.f32 %v115, %v227
    %v260 = vsub.f32 %v116, %v228
    %v261 = vsub.f32 %v117, %v229
    %v262 = vsub.f32 %v118, %v230
    %v263 = vsub.f32 %v119, %v231
    %v264 = vsub.f32 %v120, %v232
    %v265 = vsub.f32 %v121, %v233
    %v266 = vsub.f32 %v122, %v234
    %v267 = vsub.f32 %v123, %v235
    %v268 = vsub.f32 %v124, %v236
    %v269 = vsub.f32 %v125, %v237
    %v270 = vsub.f32 %v126, %v238
    %v271 = vsub.f32 %v127, %v239
    %v272 = vsub.f32 %v128, %v240
    %v273 = vsub.f32 %v129, %v241
    %v274 = vsub.f32 %v130, %v242
    %v275 = vsub.f32 %v131, %v243
    %v276 = vsub.f32 %v132, %v244
    %v277 = vsub.f32 %v133, %v245
    %v278 = vsub.f32 %v134, %v246
    %v279 = vpack.c.bf16 %v251, %v247
    %v280 = vpack.c.bf16 %v252, %v248
    %v281 = vpack.c.bf16 %v253, %v249
    %v282 = vpack.c.bf16 %v254, %v250
    %v283 = vpack.c.bf16 %v259, %v255
    %v284 = vpack.c.bf16 %v260, %v256
    %v285 = vpack.c.bf16 %v261, %v257
    %v286 = vpack.c.bf16 %v262, %v258
    %v287 = vpack.c.bf16 %v267, %v263
    %v288 = vpack.c.bf16 %v268, %v264
    %v289 = vpack.c.bf16 %v269, %v265
    %v290 = vpack.c.bf16 %v270, %v266
    %v291 = vpack.c.bf16 %v275, %v271
    %v292 = vpack.c.bf16 %v276, %v272
    %v293 = vpack.c.bf16 %v277, %v273
    %v294 = vpack.c.bf16 %v278, %v274
    %v295 = vunpack.c.l.bf16 %v279
    %v296 = vunpack.c.l.bf16 %v280
    %v297 = vunpack.c.l.bf16 %v281
    %v298 = vunpack.c.l.bf16 %v282
    %v299 = vunpack.c.h.bf16 %v279
    %v300 = vunpack.c.h.bf16 %v280
    %v301 = vunpack.c.h.bf16 %v281
    %v302 = vunpack.c.h.bf16 %v282
    %v303 = vunpack.c.l.bf16 %v283
    %v304 = vunpack.c.l.bf16 %v284
    %v305 = vunpack.c.l.bf16 %v285
    %v306 = vunpack.c.l.bf16 %v286
    %v307 = vunpack.c.h.bf16 %v283
    %v308 = vunpack.c.h.bf16 %v284
    %v309 = vunpack.c.h.bf16 %v285
    %v310 = vunpack.c.h.bf16 %v286
    %v311 = vunpack.c.l.bf16 %v287
    %v312 = vunpack.c.l.bf16 %v288
    %v313 = vunpack.c.l.bf16 %v289
    %v314 = vunpack.c.l.bf16 %v290
    %v315 = vunpack.c.h.bf16 %v287
    %v316 = vunpack.c.h.bf16 %v288
    %v317 = vunpack.c.h.bf16 %v289
    %v318 = vunpack.c.h.bf16 %v290
    %v319 = vunpack.c.l.bf16 %v291
    %v320 = vunpack.c.l.bf16 %v292
    %v321 = vunpack.c.l.bf16 %v293
    %v322 = vunpack.c.l.bf16 %v294
    %v323 = vunpack.c.h.bf16 %v291
    %v324 = vunpack.c.h.bf16 %v292
    %v325 = vunpack.c.h.bf16 %v293
    %v326 = vunpack.c.h.bf16 %v294
    %v327 = vsub.f32 %v247, %v295
    %v328 = vsub.f32 %v248, %v296
    %v329 = vsub.f32 %v249, %v297
    %v330 = vsub.f32 %v250, %v298
    %v331 = vsub.f32 %v251, %v299
    %v332 = vsub.f32 %v252, %v300
    %v333 = vsub.f32 %v253, %v301
    %v334 = vsub.f32 %v254, %v302
    %v335 = vsub.f32 %v255, %v303
    %v336 = vsub.f32 %v256, %v304
    %v337 = vsub.f32 %v257, %v305
    %v338 = vsub.f32 %v258, %v306
    %v339 = vsub.f32 %v259, %v307
    %v340 = vsub.f32 %v260, %v308
    %v341 = vsub.f32 %v261, %v309
    %v342 = vsub.f32 %v262, %v310
    %v343 = vsub.f32 %v263, %v311
    %v344 = vsub.f32 %v264, %v312
    %v345 = vsub.f32 %v265, %v313
    %v346 = vsub.f32 %v266, %v314
    %v347 = vsub.f32 %v267, %v315
    %v348 = vsub.f32 %v268, %v316
    %v349 = vsub.f32 %v269, %v317
    %v350 = vsub.f32 %v270, %v318
    %v351 = vsub.f32 %v271, %v319
    %v352 = vsub.f32 %v272, %v320
    %v353 = vsub.f32 %v273, %v321
    %v354 = vsub.f32 %v274, %v322
    %v355 = vsub.f32 %v275, %v323
    %v356 = vsub.f32 %v276, %v324
    %v357 = vsub.f32 %v277, %v325
    %v358 = vsub.f32 %v278, %v326
    %v359 = vpack.c.bf16 %v331, %v327
    %v360 = vpack.c.bf16 %v332, %v328
    %v361 = vpack.c.bf16 %v333, %v329
    %v362 = vpack.c.bf16 %v334, %v330
    %v363 = vpack.c.bf16 %v339, %v335
    %v364 = vpack.c.bf16 %v340, %v336
    %v365 = vpack.c.bf16 %v341, %v337
    %v366 = vpack.c.bf16 %v342, %v338
    %v367 = vpack.c.bf16 %v347, %v343
    %v368 = vpack.c.bf16 %v348, %v344
    %v369 = vpack.c.bf16 %v349, %v345
    %v370 = vpack.c.bf16 %v350, %v346
    %v371 = vpack.c.bf16 %v355, %v351
    %v372 = vpack.c.bf16 %v356, %v352
    %v373 = vpack.c.bf16 %v357, %v353
    %v374 = vpack.c.bf16 %v358, %v354
    %v439 = vunpack.c.l.b16 %v135
    %v440 = vunpack.c.l.b16 %v136
    %v441 = vunpack.c.l.b16 %v137
    %v442 = vunpack.c.l.b16 %v138
    %v443 = vunpack.c.l.b16 %v139
    %v444 = vunpack.c.l.b16 %v140
    %v445 = vunpack.c.l.b16 %v141
    %v446 = vunpack.c.l.b16 %v142
    %v447 = vunpack.c.l.b16 %v143
    %v448 = vunpack.c.l.b16 %v144
    %v449 = vunpack.c.l.b16 %v145
    %v450 = vunpack.c.l.b16 %v146
    %v451 = vunpack.c.l.b16 %v147
    %v452 = vunpack.c.l.b16 %v148
    %v453 = vunpack.c.l.b16 %v149
    %v454 = vunpack.c.l.b16 %v150
    %v455 = vunpack.c.l.b16 %v151
    %v456 = vunpack.c.l.b16 %v152
    %v457 = vunpack.c.l.b16 %v153
    %v458 = vunpack.c.l.b16 %v154
    %v459 = vunpack.c.l.b16 %v155
    %v460 = vunpack.c.l.b16 %v156
    %v461 = vunpack.c.l.b16 %v157
    %v462 = vunpack.c.l.b16 %v158
    %v463 = vunpack.c.l.b16 %v159
    %v464 = vunpack.c.l.b16 %v160
    %v465 = vunpack.c.l.b16 %v161
    %v466 = vunpack.c.l.b16 %v162
    %v467 = vunpack.c.l.b16 %v163
    %v468 = vunpack.c.l.b16 %v164
    %v469 = vunpack.c.l.b16 %v165
    %v470 = vunpack.c.l.b16 %v166
    %v471 = vunpack.c.l.b16 %v167
    %v472 = vunpack.c.l.b16 %v168
    %v473 = vunpack.c.l.b16 %v169
    %v474 = vunpack.c.l.b16 %v170
    %v475 = vunpack.c.l.b16 %v171
    %v476 = vunpack.c.l.b16 %v172
    %v477 = vunpack.c.l.b16 %v173
    %v478 = vunpack.c.l.b16 %v174
    %v479 = vunpack.c.l.b16 %v175
    %v480 = vunpack.c.l.b16 %v176
    %v481 = vunpack.c.l.b16 %v177
    %v482 = vunpack.c.l.b16 %v178
    %v483 = vunpack.c.l.b16 %v179
    %v484 = vunpack.c.l.b16 %v180
    %v485 = vunpack.c.l.b16 %v181
    %v486 = vunpack.c.l.b16 %v182
    %v487 = vunpack.c.l.b16 %v183
    %v488 = vunpack.c.l.b16 %v184
    %v489 = vunpack.c.l.b16 %v185
    %v490 = vunpack.c.l.b16 %v186
    %v491 = vunpack.c.l.b16 %v187
    %v492 = vunpack.c.l.b16 %v188
    %v493 = vunpack.c.l.b16 %v189
    %v494 = vunpack.c.l.b16 %v190
    %v495 = vunpack.c.l.b16 %v191
    %v496 = vunpack.c.l.b16 %v192
    %v497 = vunpack.c.l.b16 %v193
    %v498 = vunpack.c.l.b16 %v194
    %v499 = vunpack.c.l.b16 %v195
    %v500 = vunpack.c.l.b16 %v196
    %v501 = vunpack.c.l.b16 %v197
    %v502 = vunpack.c.l.b16 %v198
    %v503 = vpack.c.b16 %v440, %v439
    %v504 = vpack.c.b16 %v442, %v441
    %v505 = vpack.c.b16 %v444, %v443
    %v506 = vpack.c.b16 %v446, %v445
    %v507 = vpack.c.b16 %v448, %v447
    %v508 = vpack.c.b16 %v450, %v449
    %v509 = vpack.c.b16 %v452, %v451
    %v510 = vpack.c.b16 %v454, %v453
    %v511 = vpack.c.b16 %v456, %v455
    %v512 = vpack.c.b16 %v458, %v457
    %v513 = vpack.c.b16 %v460, %v459
    %v514 = vpack.c.b16 %v462, %v461
    %v515 = vpack.c.b16 %v464, %v463
    %v516 = vpack.c.b16 %v466, %v465
    %v517 = vpack.c.b16 %v468, %v467
    %v518 = vpack.c.b16 %v470, %v469
    %v519 = vpack.c.b16 %v472, %v471
    %v520 = vpack.c.b16 %v474, %v473
    %v521 = vpack.c.b16 %v476, %v475
    %v522 = vpack.c.b16 %v478, %v477
    %v523 = vpack.c.b16 %v480, %v479
    %v524 = vpack.c.b16 %v482, %v481
    %v525 = vpack.c.b16 %v484, %v483
    %v526 = vpack.c.b16 %v486, %v485
    %v527 = vpack.c.b16 %v488, %v487
    %v528 = vpack.c.b16 %v490, %v489
    %v529 = vpack.c.b16 %v492, %v491
    %v530 = vpack.c.b16 %v494, %v493
    %v531 = vpack.c.b16 %v496, %v495
    %v532 = vpack.c.b16 %v498, %v497
    %v533 = vpack.c.b16 %v500, %v499
    %v534 = vpack.c.b16 %v502, %v501
    %567 = vmatprep.subr.bf16.mxu0 0
    %568 = vmatpush1.bf16.msra.mxu0 %v503
    %569 = vmatprep.subr.bf16.mxu0 0
    %570 = vmatpush1.bf16.msra.mxu0 %v504
    %571 = vmatprep.subr.bf16.mxu0 0
    %572 = vmatpush1.bf16.msra.mxu0 %v505
    %573 = vmatprep.subr.bf16.mxu0 0
    %574 = vmatpush1.bf16.msra.mxu0 %v506
    %575 = vmatprep.subr.bf16.mxu0 0
    %576 = vmatpush1.bf16.msra.mxu0 %v507
    %577 = vmatprep.subr.bf16.mxu0 0
    %578 = vmatpush1.bf16.msra.mxu0 %v508
    %579 = vmatprep.subr.bf16.mxu0 0
    %580 = vmatpush1.bf16.msra.mxu0 %v509
    %581 = vmatprep.subr.bf16.mxu0 0
    %582 = vmatpush1.bf16.msra.mxu0 %v510
    %583 = vmatprep.subr.bf16.mxu0 0
    %584 = vmatpush1.bf16.msra.mxu0 %v511
    %585 = vmatprep.subr.bf16.mxu0 0
    %586 = vmatpush1.bf16.msra.mxu0 %v512
    %587 = vmatprep.subr.bf16.mxu0 0
    %588 = vmatpush1.bf16.msra.mxu0 %v513
    %589 = vmatprep.subr.bf16.mxu0 0
    %590 = vmatpush1.bf16.msra.mxu0 %v514
    %591 = vmatprep.subr.bf16.mxu0 0
    %592 = vmatpush1.bf16.msra.mxu0 %v515
    %593 = vmatprep.subr.bf16.mxu0 0
    %594 = vmatpush1.bf16.msra.mxu0 %v516
    %595 = vmatprep.subr.bf16.mxu0 0
    %596 = vmatpush1.bf16.msra.mxu0 %v517
    %597 = vmatprep.subr.bf16.mxu0 0
    %598 = vmatpush1.bf16.msra.mxu0 %v518
    %599 = vmatprep.mubr.bf16.mxu0 %v360
    %600 = vmatmul.mubr.bf16.gmra.mrb[0].mxu0 %v359
    %v601 = vpop.f32.mrb[0].mxu0
    %v602 = vadd.f32 0.0, %v601
    %v603 = vpop.f32.mrb[0].mxu0
    %v604 = vpop.f32.mrb[0].mxu0
    %v605 = vadd.f32 0.0, %v604
    %v606 = vpop.f32.mrb[0].mxu0
    %607 = vmatprep.mubr.bf16.mxu0 %v364
    %608 = vmatmul.mubr.bf16.gmra.mrb[0].mxu0 %v363
    %v609 = vpop.f32.mrb[0].mxu0
    %v610 = vadd.f32 0.0, %v609
    %v611 = vpop.f32.mrb[0].mxu0
    %v612 = vpop.f32.mrb[0].mxu0
    %v613 = vadd.f32 0.0, %v612
    %v614 = vpop.f32.mrb[0].mxu0
    %615 = vmatprep.mubr.bf16.mxu0 %v368
    %616 = vmatmul.mubr.bf16.gmra.mrb[0].mxu0 %v367
    %v617 = vpop.f32.mrb[0].mxu0
    %v618 = vadd.f32 0.0, %v617
    %v619 = vpop.f32.mrb[0].mxu0
    %v620 = vpop.f32.mrb[0].mxu0
    %v621 = vadd.f32 0.0, %v620
    %v622 = vpop.f32.mrb[0].mxu0
    %623 = vmatprep.mubr.bf16.mxu0 %v372
    %624 = vmatmul.mubr.bf16.gmra.mrb[0].mxu0 %v371
    %v625 = vpop.f32.mrb[0].mxu0
    %v626 = vadd.f32 0.0, %v625
    %v627 = vpop.f32.mrb[0].mxu0
    %v628 = vpop.f32.mrb[0].mxu0
    %v629 = vadd.f32 0.0, %v628
    %v630 = vpop.f32.mrb[0].mxu0
    %631 = vdwg.mxu0
    %632 = vmatprep.subr.bf16.mxu0 0
    %633 = vmatpush1.bf16.msra.mxu0 %v519
    %634 = vmatprep.subr.bf16.mxu0 0
    %635 = vmatpush1.bf16.msra.mxu0 %v520
    %636 = vmatprep.subr.bf16.mxu0 0
    %637 = vmatpush1.bf16.msra.mxu0 %v521
    %638 = vmatprep.subr.bf16.mxu0 0
    %639 = vmatpush1.bf16.msra.mxu0 %v522
    %640 = vmatprep.subr.bf16.mxu0 0
    %641 = vmatpush1.bf16.msra.mxu0 %v523
    %642 = vmatprep.subr.bf16.mxu0 0
    %643 = vmatpush1.bf16.msra.mxu0 %v524
    %644 = vmatprep.subr.bf16.mxu0 0
    %645 = vmatpush1.bf16.msra.mxu0 %v525
    %646 = vmatprep.subr.bf16.mxu0 0
    %647 = vmatpush1.bf16.msra.mxu0 %v526
    %648 = vmatprep.subr.bf16.mxu0 0
    %649 = vmatpush1.bf16.msra.mxu0 %v527
    %650 = vmatprep.subr.bf16.mxu0 0
    %651 = vmatpush1.bf16.msra.mxu0 %v528
    %652 = vmatprep.subr.bf16.mxu0 0
    %653 = vmatpush1.bf16.msra.mxu0 %v529
    %654 = vmatprep.subr.bf16.mxu0 0
    %655 = vmatpush1.bf16.msra.mxu0 %v530
    %656 = vmatprep.subr.bf16.mxu0 0
    %657 = vmatpush1.bf16.msra.mxu0 %v531
    %658 = vmatprep.subr.bf16.mxu0 0
    %659 = vmatpush1.bf16.msra.mxu0 %v532
    %660 = vmatprep.subr.bf16.mxu0 0
    %661 = vmatpush1.bf16.msra.mxu0 %v533
    %662 = vmatprep.subr.bf16.mxu0 0
    %663 = vmatpush1.bf16.msra.mxu0 %v534
    %664 = vmatprep.mubr.bf16.mxu0 %v362
    %665 = vmatmul.mubr.bf16.gmra.mrb[0].mxu0 %v361
    %v666 = vpop.f32.mrb[0].mxu0
    %v667 = vadd.f32 %v602, %v666
    %v668 = vpop.f32.mrb[0].mxu0
    %v669 = vpop.f32.mrb[0].mxu0
    %v670 = vadd.f32 %v605, %v669
    %v671 = vpop.f32.mrb[0].mxu0
    %672 = vmatprep.mubr.bf16.mxu0 %v366
    %673 = vmatmul.mubr.bf16.gmra.mrb[0].mxu0 %v365
    %v674 = vpop.f32.mrb[0].mxu0
    %v675 = vadd.f32 %v610, %v674
    %v676 = vpop.f32.mrb[0].mxu0
    %v677 = vpop.f32.mrb[0].mxu0
    %v678 = vadd.f32 %v613, %v677
    %v679 = vpop.f32.mrb[0].mxu0
    %680 = vmatprep.mubr.bf16.mxu0 %v370
    %681 = vmatmul.mubr.bf16.gmra.mrb[0].mxu0 %v369
    %v682 = vpop.f32.mrb[0].mxu0
    %v683 = vadd.f32 %v618, %v682
    %v684 = vpop.f32.mrb[0].mxu0
    %v685 = vpop.f32.mrb[0].mxu0
    %v686 = vadd.f32 %v621, %v685
    %v687 = vpop.f32.mrb[0].mxu0
    %688 = vmatprep.mubr.bf16.mxu0 %v374
    %689 = vmatmul.mubr.bf16.gmra.mrb[0].mxu0 %v373
    %v690 = vpop.f32.mrb[0].mxu0
    %v691 = vadd.f32 %v626, %v690
    %v692 = vpop.f32.mrb[0].mxu0
    %v693 = vpop.f32.mrb[0].mxu0
    %v694 = vadd.f32 %v629, %v693
    %v695 = vpop.f32.mrb[0].mxu0
    %696 = vdwg.mxu0
    %697 = vmatprep.subr.bf16.mxu0 0
    %698 = vmatpush1.bf16.msra.mxu0 %v503
    %699 = vmatprep.subr.bf16.mxu0 0
    %700 = vmatpush1.bf16.msra.mxu0 %v504
    %701 = vmatprep.subr.bf16.mxu0 0
    %702 = vmatpush1.bf16.msra.mxu0 %v505
    %703 = vmatprep.subr.bf16.mxu0 0
    %704 = vmatpush1.bf16.msra.mxu0 %v506
    %705 = vmatprep.subr.bf16.mxu0 0
    %706 = vmatpush1.bf16.msra.mxu0 %v507
    %707 = vmatprep.subr.bf16.mxu0 0
    %708 = vmatpush1.bf16.msra.mxu0 %v508
    %709 = vmatprep.subr.bf16.mxu0 0
    %710 = vmatpush1.bf16.msra.mxu0 %v509
    %711 = vmatprep.subr.bf16.mxu0 0
    %712 = vmatpush1.bf16.msra.mxu0 %v510
    %713 = vmatprep.subr.bf16.mxu0 0
    %714 = vmatpush1.bf16.msra.mxu0 %v511
    %715 = vmatprep.subr.bf16.mxu0 0
    %716 = vmatpush1.bf16.msra.mxu0 %v512
    %717 = vmatprep.subr.bf16.mxu0 0
    %718 = vmatpush1.bf16.msra.mxu0 %v513
    %719 = vmatprep.subr.bf16.mxu0 0
    %720 = vmatpush1.bf16.msra.mxu0 %v514
    %721 = vmatprep.subr.bf16.mxu0 0
    %722 = vmatpush1.bf16.msra.mxu0 %v515
    %723 = vmatprep.subr.bf16.mxu0 0
    %724 = vmatpush1.bf16.msra.mxu0 %v516
    %725 = vmatprep.subr.bf16.mxu0 0
    %726 = vmatpush1.bf16.msra.mxu0 %v517
    %727 = vmatprep.subr.bf16.mxu0 0
    %728 = vmatpush1.bf16.msra.mxu0 %v518
    %729 = vmatprep.mubr.bf16.mxu0 %v280
    %730 = vmatmul.mubr.bf16.gmra.mrb[0].mxu0 %v279
    %v731 = vpop.f32.mrb[0].mxu0
    %v732 = vadd.f32 %v667, %v731
    %v733 = vpop.f32.mrb[0].mxu0
    %v734 = vpop.f32.mrb[0].mxu0
    %v735 = vadd.f32 %v670, %v734
    %v736 = vpop.f32.mrb[0].mxu0
    %737 = vmatprep.mubr.bf16.mxu0 %v284
    %738 = vmatmul.mubr.bf16.gmra.mrb[0].mxu0 %v283
    %v739 = vpop.f32.mrb[0].mxu0
    %v740 = vadd.f32 %v675, %v739
    %v741 = vpop.f32.mrb[0].mxu0
    %v742 = vpop.f32.mrb[0].mxu0
    %v743 = vadd.f32 %v678, %v742
    %v744 = vpop.f32.mrb[0].mxu0
    %745 = vmatprep.mubr.bf16.mxu0 %v288
    %746 = vmatmul.mubr.bf16.gmra.mrb[0].mxu0 %v287
    %v747 = vpop.f32.mrb[0].mxu0
    %v748 = vadd.f32 %v683, %v747
    %v749 = vpop.f32.mrb[0].mxu0
    %v750 = vpop.f32.mrb[0].mxu0
    %v751 = vadd.f32 %v686, %v750
    %v752 = vpop.f32.mrb[0].mxu0
    %753 = vmatprep.mubr.bf16.mxu0 %v292
    %754 = vmatmul.mubr.bf16.gmra.mrb[0].mxu0 %v291
    %v755 = vpop.f32.mrb[0].mxu0
    %v756 = vadd.f32 %v691, %v755
    %v757 = vpop.f32.mrb[0].mxu0
    %v758 = vpop.f32.mrb[0].mxu0
    %v759 = vadd.f32 %v694, %v758
    %v760 = vpop.f32.mrb[0].mxu0
    %761 = vdwg.mxu0
    %762 = vmatprep.subr.bf16.mxu0 0
    %763 = vmatpush1.bf16.msra.mxu0 %v519
    %764 = vmatprep.subr.bf16.mxu0 0
    %765 = vmatpush1.bf16.msra.mxu0 %v520
    %766 = vmatprep.subr.bf16.mxu0 0
    %767 = vmatpush1.bf16.msra.mxu0 %v521
    %768 = vmatprep.subr.bf16.mxu0 0
    %769 = vmatpush1.bf16.msra.mxu0 %v522
    %770 = vmatprep.subr.bf16.mxu0 0
    %771 = vmatpush1.bf16.msra.mxu0 %v523
    %772 = vmatprep.subr.bf16.mxu0 0
    %773 = vmatpush1.bf16.msra.mxu0 %v524
    %774 = vmatprep.subr.bf16.mxu0 0
    %775 = vmatpush1.bf16.msra.mxu0 %v525
    %776 = vmatprep.subr.bf16.mxu0 0
    %777 = vmatpush1.bf16.msra.mxu0 %v526
    %778 = vmatprep.subr.bf16.mxu0 0
    %779 = vmatpush1.bf16.msra.mxu0 %v527
    %780 = vmatprep.subr.bf16.mxu0 0
    %781 = vmatpush1.bf16.msra.mxu0 %v528
    %782 = vmatprep.subr.bf16.mxu0 0
    %783 = vmatpush1.bf16.msra.mxu0 %v529
    %784 = vmatprep.subr.bf16.mxu0 0
    %785 = vmatpush1.bf16.msra.mxu0 %v530
    %786 = vmatprep.subr.bf16.mxu0 0
    %787 = vmatpush1.bf16.msra.mxu0 %v531
    %788 = vmatprep.subr.bf16.mxu0 0
    %789 = vmatpush1.bf16.msra.mxu0 %v532
    %790 = vmatprep.subr.bf16.mxu0 0
    %791 = vmatpush1.bf16.msra.mxu0 %v533
    %792 = vmatprep.subr.bf16.mxu0 0
    %793 = vmatpush1.bf16.msra.mxu0 %v534
    %794 = vmatprep.mubr.bf16.mxu0 %v282
    %795 = vmatmul.mubr.bf16.gmra.mrb[0].mxu0 %v281
    %v796 = vpop.f32.mrb[0].mxu0
    %v797 = vadd.f32 %v732, %v796
    %v798 = vpop.f32.mrb[0].mxu0
    %v799 = vpop.f32.mrb[0].mxu0
    %v800 = vadd.f32 %v735, %v799
    %v801 = vpop.f32.mrb[0].mxu0
    %802 = vmatprep.mubr.bf16.mxu0 %v286
    %803 = vmatmul.mubr.bf16.gmra.mrb[0].mxu0 %v285
    %v804 = vpop.f32.mrb[0].mxu0
    %v805 = vadd.f32 %v740, %v804
    %v806 = vpop.f32.mrb[0].mxu0
    %v807 = vpop.f32.mrb[0].mxu0
    %v808 = vadd.f32 %v743, %v807
    %v809 = vpop.f32.mrb[0].mxu0
    %810 = vmatprep.mubr.bf16.mxu0 %v290
    %811 = vmatmul.mubr.bf16.gmra.mrb[0].mxu0 %v289
    %v812 = vpop.f32.mrb[0].mxu0
    %v813 = vadd.f32 %v748, %v812
    %v814 = vpop.f32.mrb[0].mxu0
    %v815 = vpop.f32.mrb[0].mxu0
    %v816 = vadd.f32 %v751, %v815
    %v817 = vpop.f32.mrb[0].mxu0
    %818 = vmatprep.mubr.bf16.mxu0 %v294
    %819 = vmatmul.mubr.bf16.gmra.mrb[0].mxu0 %v293
    %v820 = vpop.f32.mrb[0].mxu0
    %v821 = vadd.f32 %v756, %v820
    %v822 = vpop.f32.mrb[0].mxu0
    %v823 = vpop.f32.mrb[0].mxu0
    %v824 = vadd.f32 %v759, %v823
    %v825 = vpop.f32.mrb[0].mxu0
    %826 = vdwg.mxu0
    %827 = vmatprep.subr.bf16.mxu0 0
    %828 = vmatpush1.bf16.msra.mxu0 %v503
    %829 = vmatprep.subr.bf16.mxu0 0
    %830 = vmatpush1.bf16.msra.mxu0 %v504
    %831 = vmatprep.subr.bf16.mxu0 0
    %832 = vmatpush1.bf16.msra.mxu0 %v505
    %833 = vmatprep.subr.bf16.mxu0 0
    %834 = vmatpush1.bf16.msra.mxu0 %v506
    %835 = vmatprep.subr.bf16.mxu0 0
    %836 = vmatpush1.bf16.msra.mxu0 %v507
    %837 = vmatprep.subr.bf16.mxu0 0
    %838 = vmatpush1.bf16.msra.mxu0 %v508
    %839 = vmatprep.subr.bf16.mxu0 0
    %840 = vmatpush1.bf16.msra.mxu0 %v509
    %841 = vmatprep.subr.bf16.mxu0 0
    %842 = vmatpush1.bf16.msra.mxu0 %v510
    %843 = vmatprep.subr.bf16.mxu0 0
    %844 = vmatpush1.bf16.msra.mxu0 %v511
    %845 = vmatprep.subr.bf16.mxu0 0
    %846 = vmatpush1.bf16.msra.mxu0 %v512
    %847 = vmatprep.subr.bf16.mxu0 0
    %848 = vmatpush1.bf16.msra.mxu0 %v513
    %849 = vmatprep.subr.bf16.mxu0 0
    %850 = vmatpush1.bf16.msra.mxu0 %v514
    %851 = vmatprep.subr.bf16.mxu0 0
    %852 = vmatpush1.bf16.msra.mxu0 %v515
    %853 = vmatprep.subr.bf16.mxu0 0
    %854 = vmatpush1.bf16.msra.mxu0 %v516
    %855 = vmatprep.subr.bf16.mxu0 0
    %856 = vmatpush1.bf16.msra.mxu0 %v517
    %857 = vmatprep.subr.bf16.mxu0 0
    %858 = vmatpush1.bf16.msra.mxu0 %v518
    %859 = vmatprep.mubr.bf16.mxu0 %v200
    %860 = vmatmul.mubr.bf16.gmra.mrb[0].mxu0 %v199
    %v861 = vpop.f32.mrb[0].mxu0
    %v862 = vadd.f32 0.0, %v861
    %v863 = vpop.f32.mrb[0].mxu0
    %v864 = vpop.f32.mrb[0].mxu0
    %v865 = vadd.f32 0.0, %v864
    %v866 = vpop.f32.mrb[0].mxu0
    %867 = vmatprep.mubr.bf16.mxu0 %v204
    %868 = vmatmul.mubr.bf16.gmra.mrb[0].mxu0 %v203
    %v869 = vpop.f32.mrb[0].mxu0
    %v870 = vadd.f32 0.0, %v869
    %v871 = vpop.f32.mrb[0].mxu0
    %v872 = vpop.f32.mrb[0].mxu0
    %v873 = vadd.f32 0.0, %v872
    %v874 = vpop.f32.mrb[0].mxu0
    %875 = vmatprep.mubr.bf16.mxu0 %v208
    %876 = vmatmul.mubr.bf16.gmra.mrb[0].mxu0 %v207
    %v877 = vpop.f32.mrb[0].mxu0
    %v878 = vadd.f32 0.0, %v877
    %v879 = vpop.f32.mrb[0].mxu0
    %v880 = vpop.f32.mrb[0].mxu0
    %v881 = vadd.f32 0.0, %v880
    %v882 = vpop.f32.mrb[0].mxu0
    %883 = vmatprep.mubr.bf16.mxu0 %v212
    %884 = vmatmul.mubr.bf16.gmra.mrb[0].mxu0 %v211
    %v885 = vpop.f32.mrb[0].mxu0
    %v886 = vadd.f32 0.0, %v885
    %v887 = vpop.f32.mrb[0].mxu0
    %v888 = vpop.f32.mrb[0].mxu0
    %v889 = vadd.f32 0.0, %v888
    %v890 = vpop.f32.mrb[0].mxu0
    %891 = vdwg.mxu0
    %892 = vmatprep.subr.bf16.mxu0 0
    %893 = vmatpush1.bf16.msra.mxu0 %v519
    %894 = vmatprep.subr.bf16.mxu0 0
    %895 = vmatpush1.bf16.msra.mxu0 %v520
    %896 = vmatprep.subr.bf16.mxu0 0
    %897 = vmatpush1.bf16.msra.mxu0 %v521
    %898 = vmatprep.subr.bf16.mxu0 0
    %899 = vmatpush1.bf16.msra.mxu0 %v522
    %900 = vmatprep.subr.bf16.mxu0 0
    %901 = vmatpush1.bf16.msra.mxu0 %v523
    %902 = vmatprep.subr.bf16.mxu0 0
    %903 = vmatpush1.bf16.msra.mxu0 %v524
    %904 = vmatprep.subr.bf16.mxu0 0
    %905 = vmatpush1.bf16.msra.mxu0 %v525
    %906 = vmatprep.subr.bf16.mxu0 0
    %907 = vmatpush1.bf16.msra.mxu0 %v526
    %908 = vmatprep.subr.bf16.mxu0 0
    %909 = vmatpush1.bf16.msra.mxu0 %v527
    %910 = vmatprep.subr.bf16.mxu0 0
    %911 = vmatpush1.bf16.msra.mxu0 %v528
    %912 = vmatprep.subr.bf16.mxu0 0
    %913 = vmatpush1.bf16.msra.mxu0 %v529
    %914 = vmatprep.subr.bf16.mxu0 0
    %915 = vmatpush1.bf16.msra.mxu0 %v530
    %916 = vmatprep.subr.bf16.mxu0 0
    %917 = vmatpush1.bf16.msra.mxu0 %v531
    %918 = vmatprep.subr.bf16.mxu0 0
    %919 = vmatpush1.bf16.msra.mxu0 %v532
    %920 = vmatprep.subr.bf16.mxu0 0
    %921 = vmatpush1.bf16.msra.mxu0 %v533
    %922 = vmatprep.subr.bf16.mxu0 0
    %923 = vmatpush1.bf16.msra.mxu0 %v534
    %924 = vmatprep.mubr.bf16.mxu0 %v202
    %925 = vmatmul.mubr.bf16.gmra.mrb[0].mxu0 %v201
    %v926 = vpop.f32.mrb[0].mxu0
    %v927 = vadd.f32 %v862, %v926
    %v928 = vpop.f32.mrb[0].mxu0
    %v929 = vpop.f32.mrb[0].mxu0
    %v930 = vadd.f32 %v865, %v929
    %v931 = vpop.f32.mrb[0].mxu0
    %932 = vmatprep.mubr.bf16.mxu0 %v206
    %933 = vmatmul.mubr.bf16.gmra.mrb[0].mxu0 %v205
    %v934 = vpop.f32.mrb[0].mxu0
    %v935 = vadd.f32 %v870, %v934
    %v936 = vpop.f32.mrb[0].mxu0
    %v937 = vpop.f32.mrb[0].mxu0
    %v938 = vadd.f32 %v873, %v937
    %v939 = vpop.f32.mrb[0].mxu0
    %940 = vmatprep.mubr.bf16.mxu0 %v210
    %941 = vmatmul.mubr.bf16.gmra.mrb[0].mxu0 %v209
    %v942 = vpop.f32.mrb[0].mxu0
    %v943 = vadd.f32 %v878, %v942
    %v944 = vpop.f32.mrb[0].mxu0
    %v945 = vpop.f32.mrb[0].mxu0
    %v946 = vadd.f32 %v881, %v945
    %v947 = vpop.f32.mrb[0].mxu0
    %948 = vmatprep.mubr.bf16.mxu0 %v214
    %949 = vmatmul.mubr.bf16.gmra.mrb[0].mxu0 %v213
    %v950 = vpop.f32.mrb[0].mxu0
    %v951 = vadd.f32 %v886, %v950
    %v952 = vpop.f32.mrb[0].mxu0
    %v953 = vpop.f32.mrb[0].mxu0
    %v954 = vadd.f32 %v889, %v953
    %v955 = vpop.f32.mrb[0].mxu0
    %956 = vdwg.mxu0
    %v957 = vadd.f32 %v797, %v927
    %v958 = vadd.f32 %v800, %v930
    %v959 = vadd.f32 %v805, %v935
    %v960 = vadd.f32 %v808, %v938
    %v961 = vadd.f32 %v813, %v943
    %v962 = vadd.f32 %v816, %v946
    %v963 = vadd.f32 %v821, %v951
    %v964 = vadd.f32 %v824, %v954
    %965 = vst [vmem:[#allocation8] sm:$0xff] %v957
    %966 = vst [vmem:[#allocation8 + $0x8] sm:$0xff] %v958
    %967 = vst [vmem:[#allocation8 + $0x10] sm:$0xff] %v959
    %968 = vst [vmem:[#allocation8 + $0x18] sm:$0xff] %v960
    %969 = vst [vmem:[#allocation8 + $0x20] sm:$0xff] %v961
    %970 = vst [vmem:[#allocation8 + $0x28] sm:$0xff] %v962
    %971 = vst [vmem:[#allocation8 + $0x30] sm:$0xff] %v963
    %972 = vst [vmem:[#allocation8 + $0x38] sm:$0xff] %v964
    // Predicated region
    $region26: #{tpu_custom_call.1} parent=1 // pred_check
      _
    $region27: #{tpu_custom_call.1} parent=1 // pred_check_branch
      %974 = sbr.rel (0) target = $region29
    $region28: #{tpu_custom_call.1} parent=1 // pred_region
      %s976 = ssub.s32 1024, 1024
      %977 = vsyncadd [#allocation4], %s976
      %s978 = sshll.u32 [#allocation8], 4
      %s979 = int_to_ptr.vmem [resolvable:$true] %s978
      %984 = dma.vmem_to_hbm [thread:$0]  %s979, 1024, %s3, [#allocation4], 128, 128, 8
    $region29: #{tpu_custom_call.1} parent=1 // pred_fallthru
      _
    // Predicated region
    $region30: #{tpu_custom_call.1} parent=1 // pred_check
      _
    $region31: #{tpu_custom_call.1} parent=1 // pred_check_branch
      %986 = sbr.rel (0) target = $region33
    $region32: #{tpu_custom_call.1} parent=1 // pred_region
      %987 = dma.done [#allocation4], 1024
    $region33: #{tpu_custom_call.1} parent=1 // pred_fallthru
      _
    %988 = vsyncpa [#allocation3], 1
    %989 = vsyncpa [#allocation6], 1
    %990 = vsyncpa [#allocation4], 1

</llo_original>
